<compile_context>
chip_gen: v7x
topology: tpu7x:2x2x1
jax: 0.10.0
libtpu: 0.0.40
codegen_flags: <defaults>
</compile_context>

<pallas_src>
import functools

import jax
import jax.numpy as jnp
from jax.experimental import pallas as pl
from jax.experimental.pallas import tpu as pltpu


def _round_up(x, m):
    return (x + m - 1) // m * m


def _vmem_capacity_bytes():
    try:
        return int(pltpu.get_tpu_info().vmem_capacity_bytes)
    except Exception:
        return 64 << 20  # conservative default (v7x per-TC VMEM)


def _pick_cblk(B, C, per_ch_bytes, target_block, require_two_steps):
    """Channel-block size: as large as the block-byte target allows; prefer an
    exact divisor of C when one is reasonably close (avoids a ragged last
    block); keep >= 2 channel blocks when required (2 TensorCores, B == 1)."""
    cblk = max(1, min(C, target_block // max(per_ch_bytes, 1)))
    if require_two_steps and B == 1 and C > 1:
        cblk = min(cblk, (C + 1) // 2)
    for cand in range(cblk, 0, -1):
        if C % cand == 0:
            if 2 * cand >= cblk:
                return cand          # largest divisor, within 2x of the target
            break
    return cblk                      # non-divisor: grid uses cdiv, last block ragged


def _causal_dwconv_kernel(w_ref, b_ref, x_ref, o_ref, xpad_ref, *, k, d, t, pad_align):
    """One (batch, channel-block) slab.

    w_ref   : (cblk, 1, K)  depthwise taps (f32, VMEM block)
    b_ref   : (cblk, 1, 1)  bias (f32, VMEM block)
    x_ref   : (cblk, T, HW) input block (input dtype)
    o_ref   : (cblk, T, HW) output block
    xpad_ref: (cblk, pad_align + T, HW) scratch in input dtype; rows
              [pad_align - pad, pad_align) are zeroed so every causal tap is a
              static sublane-offset slice (no iota/compare/select).
    """
    pad = (k - 1) * d
    cblk = x_ref.shape[0]
    hw = x_ref.shape[-1]

    xv = x_ref[...]                                   # (cblk, T, HW), input dtype
    xs = xv.astype(jnp.float32)
    wv = w_ref[...].astype(jnp.float32)               # (cblk, 1, K)
    bv = b_ref[...].astype(jnp.float32)               # (cblk, 1, 1)

    # shift == 0 tap + bias + residual folded into the accumulator init.
    acc = xs * (1.0 + wv[:, :, k - 1:k]) + bv

    if pad > 0:
        # Zero only the `pad` rows the taps actually read, then stage x at an
        # aligned sublane offset (store stays unmasked / aligned).
        xpad_ref[:, pad_align - pad:pad_align, :] = jnp.zeros((cblk, pad, hw), xv.dtype)
        xpad_ref[:, pl.ds(pad_align, t), :] = xv
        for j in range(k - 1):                        # k is small & static
            shift = (k - 1 - j) * d                   # how far back tap j looks
            tap = xpad_ref[:, pl.ds(pad_align - shift, t), :].astype(jnp.float32)
            acc = acc + wv[:, :, j:j + 1] * tap

    o_ref[...] = acc.astype(o_ref.dtype)


def video_temporal_causal(x, weight, bias, *, k, d):
    """x: (B, C, T, H, W); weight: (C, 1, K) PyTorch depthwise Conv1d weight; bias: (C,)."""
    B, C, T, H, W = x.shape
    HW = H * W
    pad = (k - 1) * d
    itemsize = jnp.dtype(x.dtype).itemsize
    sub = max(8, 32 // itemsize)                      # sublane packing of this dtype
    pad_align = _round_up(pad, sub) if pad > 0 else 0

    x2 = x.reshape(B, C, T, HW)                       # free reshape, no HBM pad pass
    w3 = weight.reshape(C, 1, k).astype(jnp.float32)
    b3 = bias.reshape(C, 1, 1).astype(jnp.float32)

    vmem_cap = _vmem_capacity_bytes()
    if vmem_cap >= (100 << 20):                       # v5e / v6e: 128 MiB VMEM, 1 TC
        target_block, hard_cap, require_two = 8 << 20, 96 << 20, False
    else:                                             # v7x-like: 64 MiB per TC, 2 TCs
        target_block, hard_cap, require_two = 4 << 20, 48 << 20, True

    per_ch = T * HW * itemsize
    cblk = _pick_cblk(B, C, per_ch, target_block, require_two)
    n_cblk = pl.cdiv(C, cblk)

    blk_bytes = cblk * T * HW * itemsize
    scratch_rows = (pad_align + T) if pad > 0 else T
    scratch_bytes = cblk * scratch_rows * HW * itemsize
    need = 4 * blk_bytes + scratch_bytes + (1 << 20)  # 2x dbl-buffered in+out + scratch
    vmem_limit = int(min(hard_cap, max(32 << 20, int(1.25 * need))))

    cost = pl.CostEstimate(
        flops=2 * (k + 1) * B * C * T * HW,
        transcendentals=0,
        bytes_accessed=2 * B * C * T * HW * itemsize + (k + 1) * C * 4,
    )

    out = pl.pallas_call(
        functools.partial(_causal_dwconv_kernel, k=k, d=d, t=T, pad_align=pad_align),
        out_shape=jax.ShapeDtypeStruct((B, C, T, HW), x.dtype),
        grid=(B, n_cblk),
        in_specs=[
            pl.BlockSpec((cblk, 1, k), lambda bi, ci: (ci, 0, 0)),      # weight
            pl.BlockSpec((cblk, 1, 1), lambda bi, ci: (ci, 0, 0)),      # bias
            pl.BlockSpec((None, cblk, T, HW), lambda bi, ci: (bi, ci, 0, 0)),
        ],
        out_specs=pl.BlockSpec((None, cblk, T, HW), lambda bi, ci: (bi, ci, 0, 0)),
        scratch_shapes=[pltpu.VMEM((cblk, scratch_rows, HW), x.dtype)],
        compiler_params=pltpu.CompilerParams(
            dimension_semantics=("parallel", "parallel"),
            vmem_limit_bytes=vmem_limit),
        cost_estimate=cost,
    )(w3, b3, x2)

    return out.reshape(B, C, T, H, W)


def ref_forward(x, weight, bias, *, k, d):
    """Pure-JAX reference matching PyTorch: Conv1d(pad=(k-1)*d), drop the last pad
    timesteps, add residual."""
    B, C, T, H, W = x.shape
    pad = (k - 1) * d
    xp = jnp.pad(x.astype(jnp.float32),
                 ((0, 0), (0, 0), (pad, 0), (0, 0), (0, 0)))
    y = jnp.broadcast_to(bias[None, :, None, None, None], x.shape).astype(jnp.float32)
    for j in range(k):
        y = y + weight[:, 0, j][None, :, None, None, None] * xp[:, :, j * d: j * d + T]
    return (y + x).astype(x.dtype)


if __name__ == "__main__":
    # Small shapes consistent with the module: i = o = C (needed for x + res).
    B, C, T, H, W = 2, 4, 8, 16, 16
    K, D = 3, 2  # module hardcodes kernel_size k=3; dilation d

    key = jax.random.PRNGKey(0)
    kx, kw, kb = jax.random.split(key, 3)
    x = jax.random.normal(kx, (B, C, T, H, W), dtype=jnp.float32)
    weight = jax.random.normal(kw, (C, 1, K), dtype=jnp.float32) * 0.1  # (o, i/groups, k)
    bias = jax.random.normal(kb, (C,), dtype=jnp.float32) * 0.1

    fn = jax.jit(lambda a, w, b: video_temporal_causal(a, w, b, k=K, d=D))
    out = fn(x, weight, bias)
    out = jax.block_until_ready(out)

    ref = ref_forward(x, weight, bias, k=K, d=D)
    err = float(jnp.max(jnp.abs(out - ref)))
    assert err < 1e-5, f"max abs err {err}"
    print("KERNEL_OK")
</pallas_src>

<mosaic_0001>
module attributes {stable_mosaic.version = 11 : i64} {
  func.func @_causal_dwconv_kernel(%arg0: i32, %arg1: i32, %arg2: memref<4x1x3xf32, #tpu.memory_space<vmem>>, %arg3: memref<4x1x1xf32, #tpu.memory_space<vmem>>, %arg4: memref<1x4x8x256xf32, #tpu.memory_space<vmem>>, %arg5: memref<1x4x8x256xf32, #tpu.memory_space<vmem>>, %arg6: memref<4x16x256xf32, #tpu.memory_space<vmem>>) attributes {dimension_semantics = [#tpu.dimension_semantics<parallel>, #tpu.dimension_semantics<parallel>], iteration_bounds = array<i64: 2, 1>, scalar_prefetch = 0 : i64, scratch_operands = 1 : i64, tpu.core_type = #tpu.core_type<tc>, window_params = [{transform_indices = @transform_0, window_bounds = array<i64: 4, 1, 3>}, {transform_indices = @transform_1, window_bounds = array<i64: 4, 1, 1>}, {transform_indices = @transform_2, window_bounds = array<i64: 1, 4, 8, 256>}, {transform_indices = @transform_3, window_bounds = array<i64: 1, 4, 8, 256>}]} {
    %c0 = arith.constant 0 : index
    %c0_0 = arith.constant 0 : index
    %c0_1 = arith.constant 0 : index
    %c0_2 = arith.constant 0 : index
    %0 = vector.load %arg4[%c0, %c0_0, %c0_1, %c0_2] : memref<1x4x8x256xf32, #tpu.memory_space<vmem>>, vector<1x4x8x256xf32>
    %1 = vector.shape_cast %0 : vector<1x4x8x256xf32> to vector<4x8x256xf32>
    %c0_3 = arith.constant 0 : index
    %c0_4 = arith.constant 0 : index
    %c0_5 = arith.constant 0 : index
    %2 = vector.load %arg2[%c0_3, %c0_4, %c0_5] : memref<4x1x3xf32, #tpu.memory_space<vmem>>, vector<4x1x3xf32>
    %c0_6 = arith.constant 0 : index
    %c0_7 = arith.constant 0 : index
    %c0_8 = arith.constant 0 : index
    %3 = vector.load %arg3[%c0_6, %c0_7, %c0_8] : memref<4x1x1xf32, #tpu.memory_space<vmem>>, vector<4x1x1xf32>
    %4 = vector.extract_strided_slice %2 {offsets = [0, 0, 2], sizes = [4, 1, 1], strides = [1, 1, 1]} : vector<4x1x3xf32> to vector<4x1x1xf32>
    %cst = arith.constant 1.000000e+00 : f32
    %5 = vector.broadcast %cst : f32 to vector<4x1x1xf32>
    %6 = arith.addf %5, %4 : vector<4x1x1xf32>
    %7 = vector.broadcast %6 : vector<4x1x1xf32> to vector<4x8x256xf32>
    %8 = arith.mulf %1, %7 : vector<4x8x256xf32>
    %9 = vector.broadcast %3 : vector<4x1x1xf32> to vector<4x8x256xf32>
    %10 = arith.addf %8, %9 : vector<4x8x256xf32>
    %cst_9 = arith.constant 0.000000e+00 : f32
    %11 = vector.broadcast %cst_9 : f32 to vector<4x4x256xf32>
    %c0_10 = arith.constant 0 : index
    %c4 = arith.constant 4 : index
    %c0_11 = arith.constant 0 : index
    %12 = vector.load %arg6[%c0_10, %c4, %c0_11] : memref<4x16x256xf32, #tpu.memory_space<vmem>>, vector<4x4x256xf32>
    tpu.vector_store %arg6[%c0_10, %c4, %c0_11], %11 {strides = array<i32>} : memref<4x16x256xf32, #tpu.memory_space<vmem>>, vector<4x4x256xf32>,
    %c0_12 = arith.constant 0 : index
    %c8 = arith.constant 8 : index
    %c0_13 = arith.constant 0 : index
    %13 = vector.load %arg6[%c0_12, %c8, %c0_13] : memref<4x16x256xf32, #tpu.memory_space<vmem>>, vector<4x8x256xf32>
    tpu.vector_store %arg6[%c0_12, %c8, %c0_13], %1 {strides = array<i32>} : memref<4x16x256xf32, #tpu.memory_space<vmem>>, vector<4x8x256xf32>,
    %c0_14 = arith.constant 0 : index
    %c4_15 = arith.constant 4 : index
    %c0_16 = arith.constant 0 : index
    %14 = vector.load %arg6[%c0_14, %c4_15, %c0_16] : memref<4x16x256xf32, #tpu.memory_space<vmem>>, vector<4x8x256xf32>
    %15 = vector.extract_strided_slice %2 {offsets = [0, 0, 0], sizes = [4, 1, 1], strides = [1, 1, 1]} : vector<4x1x3xf32> to vector<4x1x1xf32>
    %16 = vector.broadcast %15 : vector<4x1x1xf32> to vector<4x8x256xf32>
    %17 = arith.mulf %16, %14 : vector<4x8x256xf32>
    %18 = arith.addf %10, %17 : vector<4x8x256xf32>
    %c0_17 = arith.constant 0 : index
    %c6 = arith.constant 6 : index
    %c0_18 = arith.constant 0 : index
    %19 = vector.load %arg6[%c0_17, %c6, %c0_18] : memref<4x16x256xf32, #tpu.memory_space<vmem>>, vector<4x8x256xf32>
    %20 = vector.extract_strided_slice %2 {offsets = [0, 0, 1], sizes = [4, 1, 1], strides = [1, 1, 1]} : vector<4x1x3xf32> to vector<4x1x1xf32>
    %21 = vector.broadcast %20 : vector<4x1x1xf32> to vector<4x8x256xf32>
    %22 = arith.mulf %21, %19 : vector<4x8x256xf32>
    %23 = arith.addf %18, %22 : vector<4x8x256xf32>
    %c0_19 = arith.constant 0 : index
    %c0_20 = arith.constant 0 : index
    %c0_21 = arith.constant 0 : index
    %c0_22 = arith.constant 0 : index
    %24 = vector.load %arg5[%c0_19, %c0_20, %c0_21, %c0_22] : memref<1x4x8x256xf32, #tpu.memory_space<vmem>>, vector<1x4x8x256xf32>
    %25 = vector.shape_cast %24 : vector<1x4x8x256xf32> to vector<4x8x256xf32>
    %26 = vector.shape_cast %23 : vector<4x8x256xf32> to vector<1x4x8x256xf32>
    tpu.vector_store %arg5[%c0_19, %c0_20, %c0_21, %c0_22], %26 {strides = array<i32>} : memref<1x4x8x256xf32, #tpu.memory_space<vmem>>, vector<1x4x8x256xf32>,
    return
  }
  func.func @transform_0(%arg0: i32, %arg1: i32) -> (i32, i32, i32) {
    %c0_i32 = arith.constant 0 : i32
    %c0_i32_0 = arith.constant 0 : i32
    %c0_i32_1 = arith.constant 0 : i32
    return %arg1, %c0_i32, %c0_i32_0 : i32, i32, i32
  }
  func.func @transform_1(%arg0: i32, %arg1: i32) -> (i32, i32, i32) {
    %c0_i32 = arith.constant 0 : i32
    %c0_i32_0 = arith.constant 0 : i32
    %c0_i32_1 = arith.constant 0 : i32
    return %arg1, %c0_i32, %c0_i32_0 : i32, i32, i32
  }
  func.func @transform_2(%arg0: i32, %arg1: i32) -> (i32, i32, i32, i32) {
    %c0_i32 = arith.constant 0 : i32
    %c0_i32_0 = arith.constant 0 : i32
    %c0_i32_1 = arith.constant 0 : i32
    return %arg0, %arg1, %c0_i32, %c0_i32_0 : i32, i32, i32, i32
  }
  func.func @transform_3(%arg0: i32, %arg1: i32) -> (i32, i32, i32, i32) {
    %c0_i32 = arith.constant 0 : i32
    %c0_i32_0 = arith.constant 0 : i32
    %c0_i32_1 = arith.constant 0 : i32
    return %arg0, %arg1, %c0_i32, %c0_i32_0 : i32, i32, i32, i32
  }
}

</mosaic_0001>

<llo_original>
// kernel: _lambda_.1
$region0: #{_lambda_.1}
  #allocation0 [shape = 'u32[]', space=smem, size = 0x4, offset = 0x4, fixed_abs, tag = 'smem constant byte address 0x4 - core index']
  #allocation1 [shape = 'u32[144,128]{1,0:T(1,128)}', space=vmem, size = 0x12000, scoped, tag = 'internal scratch']
  #allocation2 [shape = 'f32[4,16,256]{2,1,0:T(8,128)}', space=vmem, size = 0x10000, scoped, tag = 'scratch operand']
  %s0 = inlined_call_operand.vmem [shape: f32[4,1,3], index: 0, kind: input, shape index: {}]
  %s1 = inlined_call_operand.vmem [shape: f32[4,1,1], index: 1, kind: input, shape index: {}]
  %s2 = inlined_call_operand.vmem [shape: f32[2,4,8,256], index: 2, kind: input, shape index: {}]
  %s3 = inlined_call_operand.vmem [shape: f32[2,4,8,256], index: 3, kind: output, shape index: {}]
  %s4 = sld [smem:[#allocation0]]
  $region45: #{_lambda_.1} parent=0
    _
  %s6 = ssub.s32 1, %s4
  %s7 = scalar_select 0, %s6, %s4
  loop: start=0, step=1, limit=4
  $region2: #{_lambda_.1} parent=0 // loop_pre_header
    _
  $region3: #{_lambda_.1} parent=0 // loop_header
    %s9 = sphi 0, %s13
    %p10 = scmp.ge.s32.totalorder %s9, 4
    %s16 = sphi 0, %s28
    %s17 = sphi 0, %s24
    %s18 = sphi 0, %s16
    %s19 = sphi 0, %s17
    %s20 = sphi 0, %s18
    %s21 = sphi 0, %s19
    %s31 = sphi 0, %s33
    %s34 = sphi 0, %s31
    %s35 = sphi 0, %s34
    %s51 = sphi 0, %s35
    %s57 = sphi 0, %s59
    %s60 = sphi 0, %s57
    %s61 = sphi 0, %s60
    %s77 = sphi 0, %s61
    %s85 = sphi 0, %s87
    %s88 = sphi 0, %s85
    %s89 = sphi 0, %s88
    %s105 = sphi 0, %s89
    %s113 = sphi 0, %s115
    %s116 = sphi 0, %s113
    %s117 = sphi 0, %s116
    %s133 = sphi 0, %s117
  $region4: #{_lambda_.1} parent=0 // loop_header_branch
    %12 = sbr.rel (%p10) target = $region8
  $region5: #{_lambda_.1} parent=0 // loop_body
    %s14 = ssub.s32 %s9, 1
    %s15 = ssub.s32 %s9, 2
    %s22 = sadd.s32 1, %s17
    %p23 = scmp.ge.s32.totalorder %s22, 1
    %s24 = scalar_select %p23, 0, %s22
    %s25 = sadd.s32 1, %s16
    %s26 = scalar_select %p23, %s25, %s16
    %p27 = scmp.ge.s32.totalorder %s26, 2
    %s28 = scalar_select %p27, 0, %s26
    %s29 = ssub.s32 %s17, %s24
    %p30 = scmp.eq.s32.totalorder %s29, 0
    %s32 = sadd.s32 %s31, 1
    %s33 = scalar_select %p30, %s31, %s32
    %p36 = pneg %p30
    %p37 = scmp.eq.s32.totalorder %s9, 1
    %p38 = por %p36, %p37
    %p39 = scmp.ne.s32.totalorder %s31, %s34
    %p40 = scmp.eq.s32.totalorder %s9, 0
    %p41 = por %p39, %p40
    %p42 = scmp.ne.s32.totalorder %s31, %s34
    %p43 = scmp.eq.s32.totalorder %s14, 1
    %p44 = por %p42, %p43
    %p45 = scmp.ne.s32.totalorder %s34, %s35
    %p46 = scmp.eq.s32.totalorder %s14, 0
    %p47 = por %p45, %p46
    %p48 = scmp.ne.s32.totalorder %s34, %s35
    %p49 = scmp.eq.s32.totalorder %s15, 1
    %p50 = por %p48, %p49
    %p52 = scmp.ne.s32.totalorder %s35, %s51
    %p53 = scmp.eq.s32.totalorder %s15, 0
    %p54 = por %p52, %p53
    %s55 = ssub.s32 %s17, %s24
    %p56 = scmp.eq.s32.totalorder %s55, 0
    %s58 = sadd.s32 %s57, 1
    %s59 = scalar_select %p56, %s57, %s58
    %p62 = pneg %p56
    %p63 = scmp.eq.s32.totalorder %s9, 1
    %p64 = por %p62, %p63
    %p65 = scmp.ne.s32.totalorder %s57, %s60
    %p66 = scmp.eq.s32.totalorder %s9, 0
    %p67 = por %p65, %p66
    %p68 = scmp.ne.s32.totalorder %s57, %s60
    %p69 = scmp.eq.s32.totalorder %s14, 1
    %p70 = por %p68, %p69
    %p71 = scmp.ne.s32.totalorder %s60, %s61
    %p72 = scmp.eq.s32.totalorder %s14, 0
    %p73 = por %p71, %p72
    %p74 = scmp.ne.s32.totalorder %s60, %s61
    %p75 = scmp.eq.s32.totalorder %s15, 1
    %p76 = por %p74, %p75
    %p78 = scmp.ne.s32.totalorder %s61, %s77
    %p79 = scmp.eq.s32.totalorder %s15, 0
    %p80 = por %p78, %p79
    %s81 = ssub.s32 %s16, %s28
    %s82 = ssub.s32 %s17, %s24
    %s83 = sor.u32 %s81, %s82
    %p84 = scmp.eq.s32.totalorder %s83, 0
    %s86 = sadd.s32 %s85, 1
    %s87 = scalar_select %p84, %s85, %s86
    %p90 = pneg %p84
    %p91 = scmp.eq.s32.totalorder %s9, 1
    %p92 = por %p90, %p91
    %p93 = scmp.ne.s32.totalorder %s85, %s88
    %p94 = scmp.eq.s32.totalorder %s9, 0
    %p95 = por %p93, %p94
    %p96 = scmp.ne.s32.totalorder %s85, %s88
    %p97 = scmp.eq.s32.totalorder %s14, 1
    %p98 = por %p96, %p97
    %p99 = scmp.ne.s32.totalorder %s88, %s89
    %p100 = scmp.eq.s32.totalorder %s14, 0
    %p101 = por %p99, %p100
    %p102 = scmp.ne.s32.totalorder %s88, %s89
    %p103 = scmp.eq.s32.totalorder %s15, 1
    %p104 = por %p102, %p103
    %p106 = scmp.ne.s32.totalorder %s89, %s105
    %p107 = scmp.eq.s32.totalorder %s15, 0
    %p108 = por %p106, %p107
    %s109 = ssub.s32 %s16, %s28
    %s110 = ssub.s32 %s17, %s24
    %s111 = sor.u32 %s109, %s110
    %p112 = scmp.eq.s32.totalorder %s111, 0
    %s114 = sadd.s32 %s113, 1
    %s115 = scalar_select %p112, %s113, %s114
    %p118 = pneg %p112
    %p119 = scmp.eq.s32.totalorder %s9, 1
    %p120 = por %p118, %p119
    %p121 = scmp.ne.s32.totalorder %s113, %s116
    %p122 = scmp.eq.s32.totalorder %s9, 0
    %p123 = por %p121, %p122
    %p124 = scmp.ne.s32.totalorder %s113, %s116
    %p125 = scmp.eq.s32.totalorder %s14, 1
    %p126 = por %p124, %p125
    %p127 = scmp.ne.s32.totalorder %s116, %s117
    %p128 = scmp.eq.s32.totalorder %s14, 0
    %p129 = por %p127, %p128
    %p130 = scmp.ne.s32.totalorder %s116, %s117
    %p131 = scmp.eq.s32.totalorder %s15, 1
    %p132 = por %p130, %p131
    %p134 = scmp.ne.s32.totalorder %s117, %s133
    %p135 = scmp.eq.s32.totalorder %s15, 0
    %p136 = por %p134, %p135
    %p137 = scmp.le.s32.totalorder 1, %s9
    %p138 = scmp.lt.s32.totalorder %s9, 3
    %p139 = pnand %p137, %p138
    %p140 = pneg %p139
    // Predicated region
    $region9: #{_lambda_.1} parent=5 // pred_check
      _
    $region10: #{_lambda_.1} parent=5 // pred_check_branch
      %142 = sbr.rel (%p139) target = $region12
    $region11: #{_lambda_.1} parent=5 // pred_region
      %s143 = ssub.s32 %s9, 1
      // Predicated region
      $region13: #{_lambda_.1} parent=11 // pred_check
        %p144 = pneg %p47
      $region14: #{_lambda_.1} parent=11 // pred_check_branch
        %146 = sbr.rel (%p144) target = $region16
      $region15: #{_lambda_.1} parent=11 // pred_region
        %s147 = smul.u32 4, %s19
        %p148 = scmp.lt.s32.totalorder %s147, 3
        %s149 = scalar_select %p148, %s147, 3
        %s150 = scalar_lea.vmem %s0, %s149
        %s151 = smul.u32 4, %s19
      $region16: #{_lambda_.1} parent=11 // pred_fallthru
        _
      // Predicated region
      $region17: #{_lambda_.1} parent=11 // pred_check
        %p152 = pneg %p73
      $region18: #{_lambda_.1} parent=11 // pred_check_branch
        %154 = sbr.rel (%p152) target = $region20
      $region19: #{_lambda_.1} parent=11 // pred_region
        %s155 = smul.u32 4, %s19
        %p156 = scmp.lt.s32.totalorder %s155, 3
        %s157 = scalar_select %p156, %s155, 3
        %s158 = scalar_lea.vmem %s1, %s157
        %s159 = smul.u32 4, %s19
      $region20: #{_lambda_.1} parent=11 // pred_fallthru
        _
    $region12: #{_lambda_.1} parent=5 // pred_fallthru
      _
    %p160 = scmp.lt.s32.totalorder %s9, 2
    // Predicated region
    $region21: #{_lambda_.1} parent=5 // pred_check
      %p161 = pneg %p160
    $region22: #{_lambda_.1} parent=5 // pred_check_branch
      %163 = sbr.rel (%p161) target = $region24
    $region23: #{_lambda_.1} parent=5 // pred_region
      // Predicated region
      $region25: #{_lambda_.1} parent=23 // pred_check
        %p164 = pneg %p95
      $region26: #{_lambda_.1} parent=23 // pred_check_branch
        %166 = sbr.rel (%p164) target = $region28
      $region27: #{_lambda_.1} parent=23 // pred_region
        %s167 = smul.u32 4, %s17
        %p168 = scmp.lt.s32.totalorder %s16, 1
        %s169 = scalar_select %p168, %s16, 1
        %p170 = scmp.lt.s32.totalorder %s167, 3
        %s171 = scalar_select %p170, %s167, 3
        %s172 = smul.addr %s171, 2
        %s173 = smul.addr %s169, 8
        %s174 = sadd.s32 %s172, %s173
        %s175 = smul.addr %s174, 8
        %s176 = scalar_lea.vmem %s2, %s175
        %s177 = smul.u32 4, %s17
      $region28: #{_lambda_.1} parent=23 // pred_fallthru
        _
    $region24: #{_lambda_.1} parent=5 // pred_fallthru
      _
    %p178 = scmp.le.s32.totalorder 1, %s9
    %p179 = scmp.lt.s32.totalorder %s9, 3
    %p180 = pnand %p178, %p179
    %p181 = pneg %p180
    // Predicated region
    $region29: #{_lambda_.1} parent=5 // pred_check
      _
    $region30: #{_lambda_.1} parent=5 // pred_check_branch
      %183 = sbr.rel (%p180) target = $region32
    $region31: #{_lambda_.1} parent=5 // pred_region
      %s184 = ssub.s32 %s9, 1
      %s185 = smul.u32 4, %s19
      %p186 = scmp.lt.s32.totalorder %s185, 3
      %s187 = scalar_select %p186, %s185, 3
      %s188 = scalar_lea.vmem %s0, %s187
      %p189 = pneg %p47
      %p190 = pneg %p44
      %s191 = smul.u32 4, %s19
      %p192 = scmp.lt.s32.totalorder %s191, 3
      %s193 = scalar_select %p192, %s191, 3
      %s194 = scalar_lea.vmem %s1, %s193
      %p195 = pneg %p73
      %p196 = pneg %p70
      %s197 = smul.u32 4, %s19
      %p198 = scmp.lt.s32.totalorder %s18, 1
      %s199 = scalar_select %p198, %s18, 1
      %p200 = scmp.lt.s32.totalorder %s197, 3
      %s201 = scalar_select %p200, %s197, 3
      %s202 = smul.addr %s201, 2
      %s203 = smul.addr %s199, 8
      %s204 = sadd.s32 %s202, %s203
      %s205 = smul.addr %s204, 8
      %s206 = scalar_lea.vmem %s2, %s205
      %p207 = pneg %p101
      %p208 = pneg %p98
      %p209 = pneg %p129
      %p210 = pneg %p126
      %s211 = smul.u32 4, %s19
      %p212 = scmp.lt.s32.totalorder %s18, 1
      %s213 = scalar_select %p212, %s18, 1
      %p214 = scmp.lt.s32.totalorder %s211, 3
      %s215 = scalar_select %p214, %s211, 3
      %s216 = smul.addr %s215, 2
      %s217 = smul.addr %s213, 8
      %s218 = sadd.s32 %s216, %s217
      %s219 = smul.addr %s218, 8
      %s220 = scalar_lea.vmem %s3, %s219
      %s221 = smul.u32 4, %s19
      %p222 = scmp.lt.s32.totalorder %s221, 3
      %s223 = scalar_select %p222, %s221, 3
      %s224 = scalar_lea.vmem %s0, %s223
      %s225 = smul.u32 4, %s19
      %s226 = smul.u32 4, %s19
      %p227 = scmp.lt.s32.totalorder %s226, 3
      %s228 = scalar_select %p227, %s226, 3
      %s229 = scalar_lea.vmem %s1, %s228
      %s230 = smul.u32 4, %s19
      %s231 = smul.u32 4, %s19
      %p232 = scmp.lt.s32.totalorder %s18, 1
      %s233 = scalar_select %p232, %s18, 1
      %p234 = scmp.lt.s32.totalorder %s231, 3
      %s235 = scalar_select %p234, %s231, 3
      %s236 = smul.addr %s235, 2
      %s237 = smul.addr %s233, 8
      %s238 = sadd.s32 %s236, %s237
      %s239 = smul.addr %s238, 8
      %s240 = scalar_lea.vmem %s2, %s239
      %s241 = smul.u32 4, %s19
      %s242 = smul.u32 4, %s19
      %p243 = scmp.lt.s32.totalorder %s18, 1
      %s244 = scalar_select %p243, %s18, 1
      %p245 = scmp.lt.s32.totalorder %s242, 3
      %s246 = scalar_select %p245, %s242, 3
      %s247 = smul.addr %s246, 2
      %s248 = smul.addr %s244, 8
      %s249 = sadd.s32 %s247, %s248
      %s250 = smul.addr %s249, 8
      %s251 = scalar_lea.vmem %s3, %s250
      %s252 = smul.u32 4, %s19
      %v253 = vld [vmem:[%s240] sm:$0xff]
      %v254 = vld [vmem:[%s240 + $0x8] sm:$0xff]
      %v255 = vld [vmem:[%s240 + $0x10] sm:$0xff]
      %v256 = vld [vmem:[%s240 + $0x18] sm:$0xff]
      %v257 = vld [vmem:[%s240 + $0x20] sm:$0xff]
      %v258 = vld [vmem:[%s240 + $0x28] sm:$0xff]
      %v259 = vld [vmem:[%s240 + $0x30] sm:$0xff]
      %v260 = vld [vmem:[%s240 + $0x38] sm:$0xff]
      %v261 = vld [vmem:[%s224] sm:$0x1]
      %v262 = vld [vmem:[%s224 + $0x1] sm:$0x1]
      %v263 = vld [vmem:[%s224 + $0x2] sm:$0x1]
      %v264 = vld [vmem:[%s224 + $0x3] sm:$0x1]
      %v265 = vld [vmem:[%s229] sm:$0x1]
      %v266 = vld [vmem:[%s229 + $0x1] sm:$0x1]
      %v267 = vld [vmem:[%s229 + $0x2] sm:$0x1]
      %v268 = vld [vmem:[%s229 + $0x3] sm:$0x1]
      %v269 = vadd.f32 %v261, 1.0
      %v270 = vadd.f32 %v262, 1.0
      %v271 = vadd.f32 %v263, 1.0
      %v272 = vadd.f32 %v264, 1.0
      %v277 = vlaneseq
      %v278 = vshrl.u32 %v277, 7
      %v279 = vsub.s32 0, %v278
      %v280 = vrot.slane %v269, %v279
      %v281 = vlaneseq
      %v282 = vshrl.u32 %v281, 7
      %v283 = vsub.s32 0, %v282
      %v284 = vrot.slane %v270, %v283
      %v285 = vlaneseq
      %v286 = vshrl.u32 %v285, 7
      %v287 = vsub.s32 0, %v286
      %v288 = vrot.slane %v271, %v287
      %v289 = vlaneseq
      %v290 = vshrl.u32 %v289, 7
      %v291 = vsub.s32 0, %v290
      %v292 = vrot.slane %v272, %v291
      %293 = vset.pattern.permute.xlu0 2
      %294 = vperm.xlu0 %293, %v280
      %v295 = vpop.permute.xlu0 %294
      %297 = vset.pattern.permute.xlu0 2
      %298 = vperm.xlu0 %297, %v284
      %v299 = vpop.permute.xlu0 %298
      %301 = vset.pattern.permute.xlu0 2
      %302 = vperm.xlu0 %301, %v288
      %v303 = vpop.permute.xlu0 %302
      %305 = vset.pattern.permute.xlu0 2
      %306 = vperm.xlu0 %305, %v292
      %v307 = vpop.permute.xlu0 %306
      %v309 = vmul.f32 %v253, %v295
      %v310 = vmul.f32 %v254, %v295
      %v311 = vmul.f32 %v255, %v299
      %v312 = vmul.f32 %v256, %v299
      %v313 = vmul.f32 %v257, %v303
      %v314 = vmul.f32 %v258, %v303
      %v315 = vmul.f32 %v259, %v307
      %v316 = vmul.f32 %v260, %v307
      %v321 = vlaneseq
      %v322 = vshrl.u32 %v321, 7
      %v323 = vsub.s32 0, %v322
      %v324 = vrot.slane %v265, %v323
      %v325 = vlaneseq
      %v326 = vshrl.u32 %v325, 7
      %v327 = vsub.s32 0, %v326
      %v328 = vrot.slane %v266, %v327
      %v329 = vlaneseq
      %v330 = vshrl.u32 %v329, 7
      %v331 = vsub.s32 0, %v330
      %v332 = vrot.slane %v267, %v331
      %v333 = vlaneseq
      %v334 = vshrl.u32 %v333, 7
      %v335 = vsub.s32 0, %v334
      %v336 = vrot.slane %v268, %v335
      %337 = vset.pattern.permute.xlu0 0
      %338 = vperm.xlu0 %337, %v324
      %v339 = vpop.permute.xlu0 %338
      %341 = vset.pattern.permute.xlu0 0
      %342 = vperm.xlu0 %341, %v328
      %v343 = vpop.permute.xlu0 %342
      %345 = vset.pattern.permute.xlu0 0
      %346 = vperm.xlu0 %345, %v332
      %v347 = vpop.permute.xlu0 %346
      %349 = vset.pattern.permute.xlu0 0
      %350 = vperm.xlu0 %349, %v336
      %v351 = vpop.permute.xlu0 %350
      %v353 = vadd.f32 %v309, %v339
      %v354 = vadd.f32 %v310, %v339
      %v355 = vadd.f32 %v311, %v343
      %v356 = vadd.f32 %v312, %v343
      %v357 = vadd.f32 %v313, %v347
      %v358 = vadd.f32 %v314, %v347
      %v359 = vadd.f32 %v315, %v351
      %v360 = vadd.f32 %v316, %v351
      %361 = vst [vmem:[#allocation2] sm:$0xf0] 0.0
      %362 = vst [vmem:[#allocation2 + $0x8] sm:$0xf0] 0.0
      %363 = vst [vmem:[#allocation2 + $0x20] sm:$0xf0] 0.0
      %364 = vst [vmem:[#allocation2 + $0x28] sm:$0xf0] 0.0
      %365 = vst [vmem:[#allocation2 + $0x40] sm:$0xf0] 0.0
      %366 = vst [vmem:[#allocation2 + $0x48] sm:$0xf0] 0.0
      %367 = vst [vmem:[#allocation2 + $0x60] sm:$0xf0] 0.0
      %368 = vst [vmem:[#allocation2 + $0x68] sm:$0xf0] 0.0
      %369 = vst [vmem:[#allocation2 + $0x10] sm:$0xff] %v253
      %370 = vst [vmem:[#allocation2 + $0x18] sm:$0xff] %v254
      %371 = vst [vmem:[#allocation2 + $0x30] sm:$0xff] %v255
      %372 = vst [vmem:[#allocation2 + $0x38] sm:$0xff] %v256
      %373 = vst [vmem:[#allocation2 + $0x50] sm:$0xff] %v257
      %374 = vst [vmem:[#allocation2 + $0x58] sm:$0xff] %v258
      %375 = vst [vmem:[#allocation2 + $0x70] sm:$0xff] %v259
      %376 = vst [vmem:[#allocation2 + $0x78] sm:$0xff] %v260
      %v377 = vld [vmem:[#allocation2] sm:$0xf0]
      %v378 = vld [vmem:[#allocation2 + $0x8] sm:$0xf0]
      %v379 = vld [vmem:[#allocation2 + $0x10] sm:$0xf]
      %v380 = vld [vmem:[#allocation2 + $0x18] sm:$0xf]
      %v381 = vld [vmem:[#allocation2 + $0x20] sm:$0xf0]
      %v382 = vld [vmem:[#allocation2 + $0x28] sm:$0xf0]
      %v383 = vld [vmem:[#allocation2 + $0x30] sm:$0xf]
      %v384 = vld [vmem:[#allocation2 + $0x38] sm:$0xf]
      %v385 = vld [vmem:[#allocation2 + $0x40] sm:$0xf0]
      %v386 = vld [vmem:[#allocation2 + $0x48] sm:$0xf0]
      %v387 = vld [vmem:[#allocation2 + $0x50] sm:$0xf]
      %v388 = vld [vmem:[#allocation2 + $0x58] sm:$0xf]
      %v389 = vld [vmem:[#allocation2 + $0x60] sm:$0xf0]
      %v390 = vld [vmem:[#allocation2 + $0x68] sm:$0xf0]
      %v391 = vld [vmem:[#allocation2 + $0x70] sm:$0xf]
      %v392 = vld [vmem:[#allocation2 + $0x78] sm:$0xf]
      %v397 = vlaneseq
      %v398 = vshrl.u32 %v397, 7
      %v399 = vsub.s32 0, %v398
      %v400 = vrot.slane %v261, %v399
      %v401 = vlaneseq
      %v402 = vshrl.u32 %v401, 7
      %v403 = vsub.s32 0, %v402
      %v404 = vrot.slane %v262, %v403
      %v405 = vlaneseq
      %v406 = vshrl.u32 %v405, 7
      %v407 = vsub.s32 0, %v406
      %v408 = vrot.slane %v263, %v407
      %v409 = vlaneseq
      %v410 = vshrl.u32 %v409, 7
      %v411 = vsub.s32 0, %v410
      %v412 = vrot.slane %v264, %v411
      %413 = vset.pattern.permute.xlu0 0
      %414 = vperm.xlu0 %413, %v400
      %v415 = vpop.permute.xlu0 %414
      %417 = vset.pattern.permute.xlu0 0
      %418 = vperm.xlu0 %417, %v404
      %v419 = vpop.permute.xlu0 %418
      %421 = vset.pattern.permute.xlu0 0
      %422 = vperm.xlu0 %421, %v408
      %v423 = vpop.permute.xlu0 %422
      %425 = vset.pattern.permute.xlu0 0
      %426 = vperm.xlu0 %425, %v412
      %v427 = vpop.permute.xlu0 %426
      %v429 = vmul.f32 %v415, %v377
      %v430 = vmul.f32 %v415, %v378
      %v431 = vmul.f32 %v415, %v379
      %v432 = vmul.f32 %v415, %v380
      %v433 = vmul.f32 %v419, %v381
      %v434 = vmul.f32 %v419, %v382
      %v435 = vmul.f32 %v419, %v383
      %v436 = vmul.f32 %v419, %v384
      %v437 = vmul.f32 %v423, %v385
      %v438 = vmul.f32 %v423, %v386
      %v439 = vmul.f32 %v423, %v387
      %v440 = vmul.f32 %v423, %v388
      %v441 = vmul.f32 %v427, %v389
      %v442 = vmul.f32 %v427, %v390
      %v443 = vmul.f32 %v427, %v391
      %v444 = vmul.f32 %v427, %v392
      %vm461 = vcmask 1043456
      %v462 = vrot.slane %v429, 4
      %v463 = vrot.slane %v431, 4
      %v464 = vsel %vm461, %v462, %v463
      %v465 = vrot.slane %v430, 4
      %v466 = vrot.slane %v432, 4
      %v467 = vsel %vm461, %v465, %v466
      %v468 = vrot.slane %v433, 4
      %v469 = vrot.slane %v435, 4
      %v470 = vsel %vm461, %v468, %v469
      %v471 = vrot.slane %v434, 4
      %v472 = vrot.slane %v436, 4
      %v473 = vsel %vm461, %v471, %v472
      %v474 = vrot.slane %v437, 4
      %v475 = vrot.slane %v439, 4
      %v476 = vsel %vm461, %v474, %v475
      %v477 = vrot.slane %v438, 4
      %v478 = vrot.slane %v440, 4
      %v479 = vsel %vm461, %v477, %v478
      %v480 = vrot.slane %v441, 4
      %v481 = vrot.slane %v443, 4
      %v482 = vsel %vm461, %v480, %v481
      %v483 = vrot.slane %v442, 4
      %v484 = vrot.slane %v444, 4
      %v485 = vsel %vm461, %v483, %v484
      %v494 = vadd.f32 %v353, %v464
      %v495 = vadd.f32 %v354, %v467
      %v496 = vadd.f32 %v355, %v470
      %v497 = vadd.f32 %v356, %v473
      %v498 = vadd.f32 %v357, %v476
      %v499 = vadd.f32 %v358, %v479
      %v500 = vadd.f32 %v359, %v482
      %v501 = vadd.f32 %v360, %v485
      %v502 = vld [vmem:[#allocation2] sm:$0xc0]
      %v503 = vld [vmem:[#allocation2 + $0x8] sm:$0xc0]
      %v504 = vld [vmem:[#allocation2 + $0x10] sm:$0x3f]
      %v505 = vld [vmem:[#allocation2 + $0x18] sm:$0x3f]
      %v506 = vld [vmem:[#allocation2 + $0x20] sm:$0xc0]
      %v507 = vld [vmem:[#allocation2 + $0x28] sm:$0xc0]
      %v508 = vld [vmem:[#allocation2 + $0x30] sm:$0x3f]
      %v509 = vld [vmem:[#allocation2 + $0x38] sm:$0x3f]
      %v510 = vld [vmem:[#allocation2 + $0x40] sm:$0xc0]
      %v511 = vld [vmem:[#allocation2 + $0x48] sm:$0xc0]
      %v512 = vld [vmem:[#allocation2 + $0x50] sm:$0x3f]
      %v513 = vld [vmem:[#allocation2 + $0x58] sm:$0x3f]
      %v514 = vld [vmem:[#allocation2 + $0x60] sm:$0xc0]
      %v515 = vld [vmem:[#allocation2 + $0x68] sm:$0xc0]
      %v516 = vld [vmem:[#allocation2 + $0x70] sm:$0x3f]
      %v517 = vld [vmem:[#allocation2 + $0x78] sm:$0x3f]
      %518 = vset.pattern.permute.xlu0 1
      %519 = vperm.xlu0 %518, %v400
      %v520 = vpop.permute.xlu0 %519
      %522 = vset.pattern.permute.xlu0 1
      %523 = vperm.xlu0 %522, %v404
      %v524 = vpop.permute.xlu0 %523
      %526 = vset.pattern.permute.xlu0 1
      %527 = vperm.xlu0 %526, %v408
      %v528 = vpop.permute.xlu0 %527
      %530 = vset.pattern.permute.xlu0 1
      %531 = vperm.xlu0 %530, %v412
      %v532 = vpop.permute.xlu0 %531
      %v534 = vmul.f32 %v520, %v502
      %v535 = vmul.f32 %v520, %v503
      %v536 = vmul.f32 %v520, %v504
      %v537 = vmul.f32 %v520, %v505
      %v538 = vmul.f32 %v524, %v506
      %v539 = vmul.f32 %v524, %v507
      %v540 = vmul.f32 %v524, %v508
      %v541 = vmul.f32 %v524, %v509
      %v542 = vmul.f32 %v528, %v510
      %v543 = vmul.f32 %v528, %v511
      %v544 = vmul.f32 %v528, %v512
      %v545 = vmul.f32 %v528, %v513
      %v546 = vmul.f32 %v532, %v514
      %v547 = vmul.f32 %v532, %v515
      %v548 = vmul.f32 %v532, %v516
      %v549 = vmul.f32 %v532, %v517
      %vm566 = vcmask 1041408
      %v567 = vrot.slane %v534, 6
      %v568 = vrot.slane %v536, 6
      %v569 = vsel %vm566, %v567, %v568
      %v570 = vrot.slane %v535, 6
      %v571 = vrot.slane %v537, 6
      %v572 = vsel %vm566, %v570, %v571
      %v573 = vrot.slane %v538, 6
      %v574 = vrot.slane %v540, 6
      %v575 = vsel %vm566, %v573, %v574
      %v576 = vrot.slane %v539, 6
      %v577 = vrot.slane %v541, 6
      %v578 = vsel %vm566, %v576, %v577
      %v579 = vrot.slane %v542, 6
      %v580 = vrot.slane %v544, 6
      %v581 = vsel %vm566, %v579, %v580
      %v582 = vrot.slane %v543, 6
      %v583 = vrot.slane %v545, 6
      %v584 = vsel %vm566, %v582, %v583
      %v585 = vrot.slane %v546, 6
      %v586 = vrot.slane %v548, 6
      %v587 = vsel %vm566, %v585, %v586
      %v588 = vrot.slane %v547, 6
      %v589 = vrot.slane %v549, 6
      %v590 = vsel %vm566, %v588, %v589
      %v599 = vadd.f32 %v494, %v569
      %v600 = vadd.f32 %v495, %v572
      %v601 = vadd.f32 %v496, %v575
      %v602 = vadd.f32 %v497, %v578
      %v603 = vadd.f32 %v498, %v581
      %v604 = vadd.f32 %v499, %v584
      %v605 = vadd.f32 %v500, %v587
      %v606 = vadd.f32 %v501, %v590
      %607 = vst [vmem:[%s251] sm:$0xff] %v599
      %608 = vst [vmem:[%s251 + $0x8] sm:$0xff] %v600
      %609 = vst [vmem:[%s251 + $0x10] sm:$0xff] %v601
      %610 = vst [vmem:[%s251 + $0x18] sm:$0xff] %v602
      %611 = vst [vmem:[%s251 + $0x20] sm:$0xff] %v603
      %612 = vst [vmem:[%s251 + $0x28] sm:$0xff] %v604
      %613 = vst [vmem:[%s251 + $0x30] sm:$0xff] %v605
      %614 = vst [vmem:[%s251 + $0x38] sm:$0xff] %v606
      %s615 = smul.u32 4, %s19
      %p616 = scmp.lt.s32.totalorder %s18, 1
      %s617 = scalar_select %p616, %s18, 1
      %p618 = scmp.lt.s32.totalorder %s615, 3
      %s619 = scalar_select %p618, %s615, 3
      %s620 = smul.addr %s619, 2
      %s621 = smul.addr %s617, 8
      %s622 = sadd.s32 %s620, %s621
      %s623 = smul.addr %s622, 8
      %s624 = scalar_lea.vmem %s3, %s623
      // Predicated region
      $region33: #{_lambda_.1} parent=31 // pred_check
        %p625 = pneg %p126
      $region34: #{_lambda_.1} parent=31 // pred_check_branch
        %627 = sbr.rel (%p625) target = $region36
      $region35: #{_lambda_.1} parent=31 // pred_region
        %s628 = smul.u32 4, %s19
      $region36: #{_lambda_.1} parent=31 // pred_fallthru
        _
    $region32: #{_lambda_.1} parent=5 // pred_fallthru
      _
    %p629 = scmp.le.s32.totalorder 2, %s9
    // Predicated region
    $region37: #{_lambda_.1} parent=5 // pred_check
      %p630 = pneg %p629
    $region38: #{_lambda_.1} parent=5 // pred_check_branch
      %632 = sbr.rel (%p630) target = $region40
    $region39: #{_lambda_.1} parent=5 // pred_region
      %s633 = ssub.s32 %s9, 2
      // Predicated region
      $region41: #{_lambda_.1} parent=39 // pred_check
        %p634 = pneg %p132
      $region42: #{_lambda_.1} parent=39 // pred_check_branch
        %636 = sbr.rel (%p634) target = $region44
      $region43: #{_lambda_.1} parent=39 // pred_region
        %s637 = smul.u32 4, %s21
        %p638 = scmp.lt.s32.totalorder %s20, 1
        %s639 = scalar_select %p638, %s20, 1
        %p640 = scmp.lt.s32.totalorder %s637, 3
        %s641 = scalar_select %p640, %s637, 3
        %s642 = smul.addr %s641, 2
        %s643 = smul.addr %s639, 8
        %s644 = sadd.s32 %s642, %s643
        %s645 = smul.addr %s644, 8
        %s646 = scalar_lea.vmem %s3, %s645
      $region44: #{_lambda_.1} parent=39 // pred_fallthru
        _
    $region40: #{_lambda_.1} parent=5 // pred_fallthru
      _
  $region6: #{_lambda_.1} parent=0 // loop_footer
    %s13 = sadd.s32 1, %s9
  $region7: #{_lambda_.1} parent=0 // loop_footer_branch
    %8 = sbr.rel target = $region3
  $region8: #{_lambda_.1} parent=0 // loop_exit
    _

</llo_original>
